<compile_context>
chip_gen: v7x
topology: tpu7x:2x2x1
jax: 0.10.0
libtpu: 0.0.40
codegen_flags: <defaults>
</compile_context>

<pallas_src>
import functools

import jax
import jax.numpy as jnp
from jax.experimental import pallas as pl
from jax.experimental.pallas import tpu as pltpu


def _gcn_kernel(x_ref, adj_ref, w1_ref, b1_ref, w2_ref, b2_ref, o_ref,
                lane_buf, st_buf):
    # x_ref:    (G*H, W)       bf16  graphs stacked on sublanes
    # adj_ref:  (H, H)         bf16  shared adjacency
    # w1_ref:   (W, nhid)      bf16
    # b1_ref:   (1, G*nhid)    f32   b1 tiled G times (added in lane-dense form)
    # w2_ref:   (nhid, nclass) bf16
    # b2_ref:   (1, nclass)    f32
    # o_ref:    (G*H, nclass)  f32   log-probs, graphs stacked on sublanes
    # lane_buf: (H, G*nhid)    f32   scratch: stacked -> lane-dense relayout
    # st_buf:   (G*H, nhid)    f32   scratch: lane-dense -> stacked relayout
    f32 = jnp.float32
    bf16 = jnp.bfloat16

    H = adj_ref.shape[0]
    nhid = w1_ref.shape[1]
    G = x_ref.shape[0] // H

    adj = adj_ref[...]

    # --- GraphConvolution 1: support = X @ W1, graphs stacked on sublanes
    #     (dense (G*H, W) @ (W, nhid); no block-diagonal, G-linear MACs). ---
    s1 = jnp.dot(x_ref[...], w1_ref[...], preferred_element_type=f32)  # (G*H, nhid)

    # Relayout stacked (G*H, nhid) -> lane-dense (H, G*nhid) so the shared
    # adjacency is a single matmul over all G graphs. Unrolled masked window
    # copies: load/store slots only, no MXU work.
    for g in range(G):
        lane_buf[:, g * nhid:(g + 1) * nhid] = s1[g * H:(g + 1) * H, :]
    s1_lane = lane_buf[...]

    h1 = jnp.dot(adj, s1_lane.astype(bf16), preferred_element_type=f32)
    h1 = jnp.maximum(h1 + b1_ref[...], 0.0)                  # (H, G*nhid) f32

    # --- Dropout: training=False -> identity ---
    # TODO(synk): training-mode dropout (pltpu.prng_seed / prng_random_bits)
    # is not implemented; this kernel is eval-mode only.

    # --- GraphConvolution 2: apply the shared adjacency first (lane-dense),
    #     then the per-graph weight with graphs stacked on sublanes:
    #     (adj @ H1) @ W2 == adj @ (H1 @ W2). ---
    ah1 = jnp.dot(adj, h1.astype(bf16), preferred_element_type=f32)    # (H, G*nhid)

    # Relayout lane-dense (H, G*nhid) -> stacked (G*H, nhid).
    for g in range(G):
        st_buf[g * H:(g + 1) * H, :] = ah1[:, g * nhid:(g + 1) * nhid]
    ah1_st = st_buf[...]

    out = jnp.dot(ah1_st.astype(bf16), w2_ref[...], preferred_element_type=f32)
    out = out + b2_ref[...]                                   # (G*H, nclass) f32

    # --- log_softmax over the class dim. Each row is exactly one graph-node's
    #     logits, so max/sum are per-graph exact (no cross-graph shared max).
    m = jnp.max(out, axis=-1, keepdims=True)
    z = out - m
    denom = jnp.sum(jnp.exp(z), axis=-1, keepdims=True)
    o_ref[...] = (z - jnp.log(denom)).astype(o_ref.dtype)


def _default_graphs_per_block(n_graphs, n_nodes):
    """Pick how many graphs (G) to fold into one grid step.

    Policy (perf-review driven):
      * keep >= 2 grid steps whenever possible, so ("parallel",) spreads the
        chunks over both TensorCores of a v7x chip,
      * keep the chunk to a few hundred sublane rows (amortizes the ~0.35us
        per-step overhead without blowing vreg/VMEM pressure from the
        unrolled relayout copies),
      * prefer chunks whose row count G*H is a multiple of 256 so the big
        stacked matmuls fill the 256-wide MXUs of v6e/v7x.
    """
    max_rows = 512
    candidates = []
    for d in range(1, n_graphs + 1):
        if n_graphs % d:
            continue
        if n_graphs >= 2 and n_graphs // d < 2:
            continue                       # keep >= 2 grid steps (v7x megacore)
        if d * n_nodes > max_rows:
            continue
        candidates.append(d)
    if not candidates:
        return 1
    aligned = [d for d in candidates if (d * n_nodes) % 256 == 0]
    return max(aligned) if aligned else max(candidates)


@functools.partial(jax.jit, static_argnames=("graphs_per_block",))
def gcn_forward(x, adj, w1, b1, w2, b2, *, graphs_per_block=None):
    B, L, H, W = x.shape
    N = B * L
    nhid = w1.shape[1]
    nclass = w2.shape[1]
    assert nclass == W, "output reshape back to (B, L, H, W) requires nclass == W"

    G = (_default_graphs_per_block(N, H) if graphs_per_block is None
         else graphs_per_block)
    assert N % G == 0, "graphs_per_block must divide B*L"
    num_chunks = N // G

    bf16, f32 = jnp.bfloat16, jnp.float32

    # Graphs stacked along the sublane axis: contiguous reshape, no transpose.
    x_st = x.reshape(N * H, W).astype(bf16)
    adj_b = adj.astype(bf16)
    w1_b = w1.astype(bf16)
    w2_b = w2.astype(bf16)
    b1_t = jnp.tile(b1.astype(f32), G).reshape(1, G * nhid)   # lane-dense bias
    b2_r = b2.astype(f32).reshape(1, nclass)

    # Advisory cost estimate so XLA schedules the (cheap) surrounding reshapes
    # around the kernel sensibly.
    macs = N * (H * W * nhid + 2 * H * H * nhid + H * nhid * nclass)
    cost = pl.CostEstimate(
        flops=2 * macs,
        transcendentals=N * H * (nclass + 1),                 # exp per logit + log per row
        bytes_accessed=(N * H * W * 2 + H * H * 2 + W * nhid * 2
                        + nhid * nclass * 2 + (G * nhid + nclass) * 4
                        + N * H * nclass * 4),
    )

    out_st = pl.pallas_call(
        _gcn_kernel,
        out_shape=jax.ShapeDtypeStruct((N * H, nclass), f32),
        grid_spec=pltpu.PrefetchScalarGridSpec(
            num_scalar_prefetch=0,
            grid=(num_chunks,),
            in_specs=[
                pl.BlockSpec((G * H, W), lambda i: (i, 0)),        # x chunk
                pl.BlockSpec((H, H), lambda i: (0, 0)),            # adj (invariant)
                pl.BlockSpec((W, nhid), lambda i: (0, 0)),         # W1 (invariant)
                pl.BlockSpec((1, G * nhid), lambda i: (0, 0)),     # b1 tiled
                pl.BlockSpec((nhid, nclass), lambda i: (0, 0)),    # W2 (invariant)
                pl.BlockSpec((1, nclass), lambda i: (0, 0)),       # b2
            ],
            out_specs=pl.BlockSpec((G * H, nclass), lambda i: (i, 0)),
            scratch_shapes=[
                pltpu.VMEM((H, G * nhid), f32),    # stacked -> lane-dense buf
                pltpu.VMEM((G * H, nhid), f32),    # lane-dense -> stacked buf
            ],
        ),
        compiler_params=pltpu.CompilerParams(
            dimension_semantics=("parallel",),
            vmem_limit_bytes=32 * 1024 * 1024,
        ),
        cost_estimate=cost,
    )(x_st, adj_b, w1_b, b1_t, w2_b, b2_r)

    # (N*H, nclass) rows are graph-major -> contiguous reshape back.
    return out_st.reshape(B, L, H, nclass)


def _gcn_reference(x, adj, w1, b1, w2, b2):
    """Pure-JAX f32 reference mirroring the PyTorch module (eval mode)."""
    B, L, H, W = x.shape
    xf = x.reshape(B * L, H, W)
    s1 = jnp.einsum("ghw,wf->ghf", xf, w1)
    h1 = jax.nn.relu(jnp.einsum("ij,gjf->gif", adj, s1) + b1)
    s2 = jnp.einsum("ghf,fc->ghc", h1, w2)
    out = jnp.einsum("ij,gjc->gic", adj, s2) + b2
    return jax.nn.log_softmax(out, axis=-1).reshape(B, L, H, -1)


def init_params(key, nfeat, nhid, nclass):
    # pygcn GraphConvolution: uniform(-stdv, stdv), stdv = 1 / sqrt(out_features)
    k1, k2, k3, k4 = jax.random.split(key, 4)
    s1 = 1.0 / jnp.sqrt(jnp.float32(nhid))
    s2 = 1.0 / jnp.sqrt(jnp.float32(nclass))
    w1 = jax.random.uniform(k1, (nfeat, nhid), jnp.float32, -s1, s1)
    b1 = jax.random.uniform(k2, (nhid,), jnp.float32, -s1, s1)
    w2 = jax.random.uniform(k3, (nhid, nclass), jnp.float32, -s2, s2)
    b2 = jax.random.uniform(k4, (nclass,), jnp.float32, -s2, s2)
    return w1, b1, w2, b2


if __name__ == "__main__":
    # x: (B, L, H, W); H = num nodes, W = nfeat = nclass (required by the
    # reshape back to (B, L, H, W) in the original module).
    B, L, H, W = 2, 4, 16, 16
    nfeat, nhid, nclass = W, 32, W

    key = jax.random.PRNGKey(0)
    kx, kadj, kp = jax.random.split(key, 3)

    x = jax.random.normal(kx, (B, L, H, W), jnp.float32)

    # Deterministic symmetric row-normalized adjacency (self-loops included).
    a = (jax.random.uniform(kadj, (H, H)) > 0.7).astype(jnp.float32)
    a = jnp.maximum(a, a.T) + jnp.eye(H, dtype=jnp.float32)
    adj = a / jnp.sum(a, axis=1, keepdims=True)

    w1, b1, w2, b2 = init_params(kp, nfeat, nhid, nclass)

    out = gcn_forward(x, adj, w1, b1, w2, b2)
    jax.block_until_ready(out)

    expected = _gcn_reference(x, adj, w1, b1, w2, b2)

    assert out.shape == (B, L, H, W)
    # log_softmax rows sum (in prob space) to ~1.
    prob_sums = jnp.exp(out).sum(axis=-1)
    assert bool(jnp.allclose(prob_sums, 1.0, atol=1e-4))
    # bf16 matmul operands with f32 accumulation -> loose tolerance vs f32 ref.
    max_err = float(jnp.max(jnp.abs(out - expected)))
    assert max_err < 0.15, f"max abs err vs reference = {max_err}"

    print("KERNEL_OK")
</pallas_src>

<mosaic_0001>
module attributes {stable_mosaic.version = 11 : i64} {
  func.func @_gcn_kernel(%arg0: i32, %arg1: memref<64x16xbf16, #tpu.memory_space<vmem>>, %arg2: memref<16x16xbf16, #tpu.memory_space<vmem>>, %arg3: memref<16x32xbf16, #tpu.memory_space<vmem>>, %arg4: memref<1x128xf32, #tpu.memory_space<vmem>>, %arg5: memref<32x16xbf16, #tpu.memory_space<vmem>>, %arg6: memref<1x16xf32, #tpu.memory_space<vmem>>, %arg7: memref<64x16xf32, #tpu.memory_space<vmem>>, %arg8: memref<16x128xf32, #tpu.memory_space<vmem>>, %arg9: memref<64x32xf32, #tpu.memory_space<vmem>>) attributes {dimension_semantics = [#tpu.dimension_semantics<parallel>], iteration_bounds = array<i64: 2>, scalar_prefetch = 0 : i64, scratch_operands = 2 : i64, tpu.core_type = #tpu.core_type<tc>, window_params = [{transform_indices = @transform_0, window_bounds = array<i64: 64, 16>}, {pipeline_mode = #tpu.pipeline_mode<synchronous>, transform_indices = @transform_1, window_bounds = array<i64: 16, 16>}, {pipeline_mode = #tpu.pipeline_mode<synchronous>, transform_indices = @transform_2, window_bounds = array<i64: 16, 32>}, {pipeline_mode = #tpu.pipeline_mode<synchronous>, transform_indices = @transform_3, window_bounds = array<i64: 1, 128>}, {pipeline_mode = #tpu.pipeline_mode<synchronous>, transform_indices = @transform_4, window_bounds = array<i64: 32, 16>}, {pipeline_mode = #tpu.pipeline_mode<synchronous>, transform_indices = @transform_5, window_bounds = array<i64: 1, 16>}, {transform_indices = @transform_6, window_bounds = array<i64: 64, 16>}]} {
    %c0 = arith.constant 0 : index
    %c0_0 = arith.constant 0 : index
    %0 = vector.load %arg2[%c0, %c0_0] : memref<16x16xbf16, #tpu.memory_space<vmem>>, vector<16x16xbf16>
    %c0_1 = arith.constant 0 : index
    %c0_2 = arith.constant 0 : index
    %1 = vector.load %arg1[%c0_1, %c0_2] : memref<64x16xbf16, #tpu.memory_space<vmem>>, vector<64x16xbf16>
    %c0_3 = arith.constant 0 : index
    %c0_4 = arith.constant 0 : index
    %2 = vector.load %arg3[%c0_3, %c0_4] : memref<16x32xbf16, #tpu.memory_space<vmem>>, vector<16x32xbf16>
    %cst = arith.constant dense<0.000000e+00> : vector<64x32xf32>
    %3 = tpu.matmul %1, %2, %cst {dimension_numbers = #tpu.dot_dimension_numbers<[1], [0], [0], [1], [0, 0, 1, 1], [], []>} : vector<64x16xbf16>, vector<16x32xbf16>, vector<64x32xf32> -> vector<64x32xf32>
    %4 = vector.extract_strided_slice %3 {offsets = [0, 0], sizes = [16, 32], strides = [1, 1]} : vector<64x32xf32> to vector<16x32xf32>
    %c0_5 = arith.constant 0 : index
    %c0_6 = arith.constant 0 : index
    %5 = vector.load %arg8[%c0_5, %c0_6] : memref<16x128xf32, #tpu.memory_space<vmem>>, vector<16x32xf32>
    tpu.vector_store %arg8[%c0_5, %c0_6], %4 {strides = array<i32>} : memref<16x128xf32, #tpu.memory_space<vmem>>, vector<16x32xf32>,
    %6 = vector.extract_strided_slice %3 {offsets = [16, 0], sizes = [16, 32], strides = [1, 1]} : vector<64x32xf32> to vector<16x32xf32>
    %c0_7 = arith.constant 0 : index
    %c32 = arith.constant 32 : index
    %7 = vector.load %arg8[%c0_7, %c32] : memref<16x128xf32, #tpu.memory_space<vmem>>, vector<16x32xf32>
    tpu.vector_store %arg8[%c0_7, %c32], %6 {strides = array<i32>} : memref<16x128xf32, #tpu.memory_space<vmem>>, vector<16x32xf32>,
    %8 = vector.extract_strided_slice %3 {offsets = [32, 0], sizes = [16, 32], strides = [1, 1]} : vector<64x32xf32> to vector<16x32xf32>
    %c0_8 = arith.constant 0 : index
    %c64 = arith.constant 64 : index
    %9 = vector.load %arg8[%c0_8, %c64] : memref<16x128xf32, #tpu.memory_space<vmem>>, vector<16x32xf32>
    tpu.vector_store %arg8[%c0_8, %c64], %8 {strides = array<i32>} : memref<16x128xf32, #tpu.memory_space<vmem>>, vector<16x32xf32>,
    %10 = vector.extract_strided_slice %3 {offsets = [48, 0], sizes = [16, 32], strides = [1, 1]} : vector<64x32xf32> to vector<16x32xf32>
    %c0_9 = arith.constant 0 : index
    %c96 = arith.constant 96 : index
    %11 = vector.load %arg8[%c0_9, %c96] : memref<16x128xf32, #tpu.memory_space<vmem>>, vector<16x32xf32>
    tpu.vector_store %arg8[%c0_9, %c96], %10 {strides = array<i32>} : memref<16x128xf32, #tpu.memory_space<vmem>>, vector<16x32xf32>,
    %c0_10 = arith.constant 0 : index
    %c0_11 = arith.constant 0 : index
    %12 = vector.load %arg8[%c0_10, %c0_11] : memref<16x128xf32, #tpu.memory_space<vmem>>, vector<16x128xf32>
    %13 = arith.truncf %12 : vector<16x128xf32> to vector<16x128xbf16>
    %cst_12 = arith.constant dense<0.000000e+00> : vector<16x128xf32>
    %14 = tpu.matmul %0, %13, %cst_12 {dimension_numbers = #tpu.dot_dimension_numbers<[1], [0], [0], [1], [0, 0, 1, 1], [], []>} : vector<16x16xbf16>, vector<16x128xbf16>, vector<16x128xf32> -> vector<16x128xf32>
    %c0_13 = arith.constant 0 : index
    %c0_14 = arith.constant 0 : index
    %15 = vector.load %arg4[%c0_13, %c0_14] : memref<1x128xf32, #tpu.memory_space<vmem>>, vector<1x128xf32>
    %16 = vector.broadcast %15 : vector<1x128xf32> to vector<16x128xf32>
    %17 = arith.addf %14, %16 : vector<16x128xf32>
    %cst_15 = arith.constant 0.000000e+00 : f32
    %18 = vector.broadcast %cst_15 : f32 to vector<16x128xf32>
    %19 = arith.maximumf %17, %18 : vector<16x128xf32>
    %20 = arith.truncf %19 : vector<16x128xf32> to vector<16x128xbf16>
    %cst_16 = arith.constant dense<0.000000e+00> : vector<16x128xf32>
    %21 = tpu.matmul %0, %20, %cst_16 {dimension_numbers = #tpu.dot_dimension_numbers<[1], [0], [0], [1], [0, 0, 1, 1], [], []>} : vector<16x16xbf16>, vector<16x128xbf16>, vector<16x128xf32> -> vector<16x128xf32>
    %22 = vector.extract_strided_slice %21 {offsets = [0, 0], sizes = [16, 32], strides = [1, 1]} : vector<16x128xf32> to vector<16x32xf32>
    %c0_17 = arith.constant 0 : index
    %c0_18 = arith.constant 0 : index
    %23 = vector.load %arg9[%c0_17, %c0_18] : memref<64x32xf32, #tpu.memory_space<vmem>>, vector<16x32xf32>
    tpu.vector_store %arg9[%c0_17, %c0_18], %22 {strides = array<i32>} : memref<64x32xf32, #tpu.memory_space<vmem>>, vector<16x32xf32>,
    %24 = vector.extract_strided_slice %21 {offsets = [0, 32], sizes = [16, 32], strides = [1, 1]} : vector<16x128xf32> to vector<16x32xf32>
    %c16 = arith.constant 16 : index
    %c0_19 = arith.constant 0 : index
    %25 = vector.load %arg9[%c16, %c0_19] : memref<64x32xf32, #tpu.memory_space<vmem>>, vector<16x32xf32>
    tpu.vector_store %arg9[%c16, %c0_19], %24 {strides = array<i32>} : memref<64x32xf32, #tpu.memory_space<vmem>>, vector<16x32xf32>,
    %26 = vector.extract_strided_slice %21 {offsets = [0, 64], sizes = [16, 32], strides = [1, 1]} : vector<16x128xf32> to vector<16x32xf32>
    %c32_20 = arith.constant 32 : index
    %c0_21 = arith.constant 0 : index
    %27 = vector.load %arg9[%c32_20, %c0_21] : memref<64x32xf32, #tpu.memory_space<vmem>>, vector<16x32xf32>
    tpu.vector_store %arg9[%c32_20, %c0_21], %26 {strides = array<i32>} : memref<64x32xf32, #tpu.memory_space<vmem>>, vector<16x32xf32>,
    %28 = vector.extract_strided_slice %21 {offsets = [0, 96], sizes = [16, 32], strides = [1, 1]} : vector<16x128xf32> to vector<16x32xf32>
    %c48 = arith.constant 48 : index
    %c0_22 = arith.constant 0 : index
    %29 = vector.load %arg9[%c48, %c0_22] : memref<64x32xf32, #tpu.memory_space<vmem>>, vector<16x32xf32>
    tpu.vector_store %arg9[%c48, %c0_22], %28 {strides = array<i32>} : memref<64x32xf32, #tpu.memory_space<vmem>>, vector<16x32xf32>,
    %c0_23 = arith.constant 0 : index
    %c0_24 = arith.constant 0 : index
    %30 = vector.load %arg9[%c0_23, %c0_24] : memref<64x32xf32, #tpu.memory_space<vmem>>, vector<64x32xf32>
    %31 = arith.truncf %30 : vector<64x32xf32> to vector<64x32xbf16>
    %c0_25 = arith.constant 0 : index
    %c0_26 = arith.constant 0 : index
    %32 = vector.load %arg5[%c0_25, %c0_26] : memref<32x16xbf16, #tpu.memory_space<vmem>>, vector<32x16xbf16>
    %cst_27 = arith.constant dense<0.000000e+00> : vector<64x16xf32>
    %33 = tpu.matmul %31, %32, %cst_27 {dimension_numbers = #tpu.dot_dimension_numbers<[1], [0], [0], [1], [0, 0, 1, 1], [], []>} : vector<64x32xbf16>, vector<32x16xbf16>, vector<64x16xf32> -> vector<64x16xf32>
    %c0_28 = arith.constant 0 : index
    %c0_29 = arith.constant 0 : index
    %34 = vector.load %arg6[%c0_28, %c0_29] : memref<1x16xf32, #tpu.memory_space<vmem>>, vector<1x16xf32>
    %35 = vector.broadcast %34 : vector<1x16xf32> to vector<64x16xf32>
    %36 = arith.addf %33, %35 : vector<64x16xf32>
    %cst_30 = arith.constant dense<0xFF800000> : vector<64xf32>
    %37 = vector.multi_reduction <maximumf>, %36, %cst_30 [1] : vector<64x16xf32> to vector<64xf32>
    %38 = vector.shape_cast %37 : vector<64xf32> to vector<64x1xf32>
    %39 = vector.broadcast %38 : vector<64x1xf32> to vector<64x16xf32>
    %40 = arith.subf %36, %39 : vector<64x16xf32>
    %41 = math.exp %40 : vector<64x16xf32>
    %cst_31 = arith.constant dense<0.000000e+00> : vector<64xf32>
    %42 = vector.multi_reduction <add>, %41, %cst_31 [1] : vector<64x16xf32> to vector<64xf32>
    %43 = vector.shape_cast %42 : vector<64xf32> to vector<64x1xf32>
    %44 = math.log %43 : vector<64x1xf32>
    %45 = vector.broadcast %44 : vector<64x1xf32> to vector<64x16xf32>
    %46 = arith.subf %40, %45 : vector<64x16xf32>
    %c0_32 = arith.constant 0 : index
    %c0_33 = arith.constant 0 : index
    %47 = vector.load %arg7[%c0_32, %c0_33] : memref<64x16xf32, #tpu.memory_space<vmem>>, vector<64x16xf32>
    tpu.vector_store %arg7[%c0_32, %c0_33], %46 {strides = array<i32>} : memref<64x16xf32, #tpu.memory_space<vmem>>, vector<64x16xf32>,
    return
  }
  func.func @transform_0(%arg0: i32) -> (i32, i32) {
    %c0_i32 = arith.constant 0 : i32
    %c0_i32_0 = arith.constant 0 : i32
    return %arg0, %c0_i32 : i32, i32
  }
  func.func @transform_1(%arg0: i32) -> (i32, i32) {
    %c0_i32 = arith.constant 0 : i32
    %c0_i32_0 = arith.constant 0 : i32
    %c0_i32_1 = arith.constant 0 : i32
    return %c0_i32, %c0_i32_0 : i32, i32
  }
  func.func @transform_2(%arg0: i32) -> (i32, i32) {
    %c0_i32 = arith.constant 0 : i32
    %c0_i32_0 = arith.constant 0 : i32
    %c0_i32_1 = arith.constant 0 : i32
    return %c0_i32, %c0_i32_0 : i32, i32
  }
  func.func @transform_3(%arg0: i32) -> (i32, i32) {
    %c0_i32 = arith.constant 0 : i32
    %c0_i32_0 = arith.constant 0 : i32
    %c0_i32_1 = arith.constant 0 : i32
    return %c0_i32, %c0_i32_0 : i32, i32
  }
  func.func @transform_4(%arg0: i32) -> (i32, i32) {
    %c0_i32 = arith.constant 0 : i32
    %c0_i32_0 = arith.constant 0 : i32
    %c0_i32_1 = arith.constant 0 : i32
    return %c0_i32, %c0_i32_0 : i32, i32
  }
  func.func @transform_5(%arg0: i32) -> (i32, i32) {
    %c0_i32 = arith.constant 0 : i32
    %c0_i32_0 = arith.constant 0 : i32
    %c0_i32_1 = arith.constant 0 : i32
    return %c0_i32, %c0_i32_0 : i32, i32
  }
  func.func @transform_6(%arg0: i32) -> (i32, i32) {
    %c0_i32 = arith.constant 0 : i32
    %c0_i32_0 = arith.constant 0 : i32
    return %arg0, %c0_i32 : i32, i32
  }
}

</mosaic_0001>

<llo_original>
// kernel: tile.8
$region0: #{tile.8}
  #allocation0 [shape = 's32[1]{0}', space=sflag, size = 0x4, scoped, tag = 'scoped memory for tile.8']
  %s0 = inlined_call_operand.vmem [shape: f32[32], index: 0, kind: input, shape index: {}]
  %s1 = inlined_call_operand.vmem [shape: f32[4,32], index: 1, kind: output, shape index: {}]
  // Predicated region
  $region2: #{tile.8} parent=0 // pred_check
    _
  $region3: #{tile.8} parent=0 // pred_check_branch
    %3 = sbr.rel (0) target = $region5
  $region4: #{tile.8} parent=0 // pred_region
    _
  $region5: #{tile.8} parent=0 // pred_fallthru
    _
  %v4 = vld [vmem:[%s0] ss:$0 sm:$0xff]
  %5 = vst [vmem:[%s1] sm:$0xf] %v4

// kernel: tile.9
$region0: #{tile.9}
  %s0 = inlined_call_operand.vmem [shape: f32[4,32], index: 0, kind: input, shape index: {}]
  %s1 = inlined_call_operand.vmem [shape: f32[1,128], index: 1, kind: output, shape index: {}]
  $region1: #{tile.9} parent=0
    #allocation0 [shape = 'u8[4096]{0}', space=vmem, size = 0x1000, scoped, tag = 'scoped mem for output reshape']
    #allocation1 [shape = 'u8[4096]{0}', space=vmem, size = 0x1000, scoped, tag = 'scoped mem for input reshape']
    %s3 = sshllo.u32 0, 4
    %v4 = vld [vmem:[%s0] sm:%s3]
    %5 = vst [vmem:[#allocation1] sm:%s3] %v4
    %v6 = vld [vmem:[#allocation1] sm:$0x1]
    %vm7 = vcmask 261120
    %8 = vst.msk [vmem:[#allocation0] sm:$0x1] %vm7, %v6
    %s9 = scalar_lea.vmem [#allocation1], 3
    %v10 = vld [vmem:[%s9] sm:$0x1]
    %11 = vrot.lane.b32.xlu0 %v10, 96
    %v12 = vpop.permute.xlu0 %11
    %vm13 = vcmask 1048320
    %14 = vst.msk [vmem:[#allocation0] sm:$0x1] %vm13, %v12
    %s15 = scalar_lea.vmem [#allocation1], 2
    %v16 = vld [vmem:[%s15] sm:$0x1]
    %17 = vrot.lane.b32.xlu0 %v16, 64
    %v18 = vpop.permute.xlu0 %17
    %vm19 = vcmask 785920
    %20 = vst.msk [vmem:[#allocation0] sm:$0x1] %vm19, %v18
    %s21 = scalar_lea.vmem [#allocation1], 1
    %v22 = vld [vmem:[%s21] sm:$0x1]
    %23 = vrot.lane.b32.xlu0 %v22, 32
    %v24 = vpop.permute.xlu0 %23
    %vm25 = vcmask 523520
    %26 = vst.msk [vmem:[#allocation0] sm:$0x1] %vm25, %v24
    %s28 = sshllo.u32 0, 1
    %v30 = vld [vmem:[#allocation0] sm:%s28]
    %s31 = sshllo.u32 0, 1
    %32 = vst [vmem:[%s1] sm:%s31] %v30

// kernel: gcn_forward.1
$region0: #{gcn_forward.1}
  #allocation0 [shape = 'u32[]', space=smem, size = 0x4, offset = 0x4, fixed_abs, tag = 'smem constant byte address 0x4 - core index']
  #allocation1 [shape = 'u32[144,128]{1,0:T(1,128)}', space=vmem, size = 0x12000, scoped, tag = 'internal scratch']
  #allocation2 [shape = 'f32[16,128]{1,0:T(8,128)}', space=vmem, size = 0x2000, scoped, tag = 'scratch operand']
  #allocation3 [shape = 'f32[64,32]{1,0:T(8,128)}', space=vmem, size = 0x8000, scoped, tag = 'scratch operand']
  %s0 = inlined_call_operand.vmem [shape: bf16[128,16], index: 0, kind: input, shape index: {}]
  %s1 = inlined_call_operand.vmem [shape: bf16[16,16], index: 1, kind: input, shape index: {}]
  %s2 = inlined_call_operand.vmem [shape: bf16[16,32], index: 2, kind: input, shape index: {}]
  %s3 = inlined_call_operand.vmem [shape: f32[1,128], index: 3, kind: input, shape index: {}]
  %s4 = inlined_call_operand.vmem [shape: bf16[32,16], index: 4, kind: input, shape index: {}]
  %s5 = inlined_call_operand.vmem [shape: f32[1,16], index: 5, kind: input, shape index: {}]
  %s6 = inlined_call_operand.hbm [shape: f32[128,16], index: 6, kind: output, shape index: {}]
  %s7 = sld [smem:[#allocation0]]
  $region57: #{gcn_forward.1} parent=0
    _
  %s9 = ssub.s32 1, %s7
  %s10 = scalar_select 0, %s9, %s7
  $region1: #{gcn_forward.1} parent=0
    #allocation4 [shape = 'u8[65536]{0}', space=vmem, size = 0x10000, scoped, tag = 'output window, operand 0']
    #allocation5 [shape = 's32[2]{0}', space=sflag, size = 0x8, scoped, tag = 'scoped memory for gcn_forward.1']
    %11 = vsyncpa [#allocation5], 0
    %s12 = scalar_lea.sflag [#allocation5], 1
    %13 = vsyncpa %s12, 0
    loop: start=0, step=1, limit=4
    $region2: #{gcn_forward.1} parent=1 // loop_pre_header
      _
    $region3: #{gcn_forward.1} parent=1 // loop_header
      %s15 = sphi 0, %s19
      %p16 = scmp.ge.s32.totalorder %s15, 4
      %s25 = sphi 0, %s27
      %s28 = sphi 0, %s25
      %s29 = sphi 0, %s28
      %s45 = sphi 0, %s29
      %s49 = sphi 0, %s49
      %s51 = sphi 0, %s49
      %s52 = sphi 0, %s51
      %s66 = sphi 0, %s52
      %s70 = sphi 0, %s70
      %s72 = sphi 0, %s70
      %s73 = sphi 0, %s72
      %s87 = sphi 0, %s73
      %s91 = sphi 0, %s91
      %s93 = sphi 0, %s91
      %s94 = sphi 0, %s93
      %s108 = sphi 0, %s94
      %s112 = sphi 0, %s112
      %s114 = sphi 0, %s112
      %s115 = sphi 0, %s114
      %s129 = sphi 0, %s115
      %s133 = sphi 0, %s133
      %s135 = sphi 0, %s133
      %s136 = sphi 0, %s135
      %s150 = sphi 0, %s136
      %s156 = sphi 0, %s158
      %s159 = sphi 0, %s156
      %s160 = sphi 0, %s159
      %s176 = sphi 0, %s160
    $region4: #{gcn_forward.1} parent=1 // loop_header_branch
      %18 = sbr.rel (%p16) target = $region8
    $region5: #{gcn_forward.1} parent=1 // loop_body
      %s20 = ssub.s32 %s15, 1
      %s21 = ssub.s32 %s15, 2
      %s22 = sadd.s32 %s15, 1
      %s23 = ssub.s32 %s15, %s22
      %p24 = scmp.eq.s32.totalorder %s23, 0
      %s26 = sadd.s32 %s25, 1
      %s27 = scalar_select %p24, %s25, %s26
      %p30 = pneg %p24
      %p31 = scmp.eq.s32.totalorder %s15, 1
      %p32 = por %p30, %p31
      %p33 = scmp.ne.s32.totalorder %s25, %s28
      %p34 = scmp.eq.s32.totalorder %s15, 0
      %p35 = por %p33, %p34
      %p36 = scmp.ne.s32.totalorder %s25, %s28
      %p37 = scmp.eq.s32.totalorder %s20, 1
      %p38 = por %p36, %p37
      %p39 = scmp.ne.s32.totalorder %s28, %s29
      %p40 = scmp.eq.s32.totalorder %s20, 0
      %p41 = por %p39, %p40
      %p42 = scmp.ne.s32.totalorder %s28, %s29
      %p43 = scmp.eq.s32.totalorder %s21, 1
      %p44 = por %p42, %p43
      %p46 = scmp.ne.s32.totalorder %s29, %s45
      %p47 = scmp.eq.s32.totalorder %s21, 0
      %p48 = por %p46, %p47
      %s50 = sadd.s32 %s49, 1
      %p53 = scmp.eq.s32.totalorder %s15, 1
      %p54 = scmp.ne.s32.totalorder %s49, %s51
      %p55 = scmp.eq.s32.totalorder %s15, 0
      %p56 = por %p54, %p55
      %p57 = scmp.ne.s32.totalorder %s49, %s51
      %p58 = scmp.eq.s32.totalorder %s20, 1
      %p59 = por %p57, %p58
      %p60 = scmp.ne.s32.totalorder %s51, %s52
      %p61 = scmp.eq.s32.totalorder %s20, 0
      %p62 = por %p60, %p61
      %p63 = scmp.ne.s32.totalorder %s51, %s52
      %p64 = scmp.eq.s32.totalorder %s21, 1
      %p65 = por %p63, %p64
      %p67 = scmp.ne.s32.totalorder %s52, %s66
      %p68 = scmp.eq.s32.totalorder %s21, 0
      %p69 = por %p67, %p68
      %s71 = sadd.s32 %s70, 1
      %p74 = scmp.eq.s32.totalorder %s15, 1
      %p75 = scmp.ne.s32.totalorder %s70, %s72
      %p76 = scmp.eq.s32.totalorder %s15, 0
      %p77 = por %p75, %p76
      %p78 = scmp.ne.s32.totalorder %s70, %s72
      %p79 = scmp.eq.s32.totalorder %s20, 1
      %p80 = por %p78, %p79
      %p81 = scmp.ne.s32.totalorder %s72, %s73
      %p82 = scmp.eq.s32.totalorder %s20, 0
      %p83 = por %p81, %p82
      %p84 = scmp.ne.s32.totalorder %s72, %s73
      %p85 = scmp.eq.s32.totalorder %s21, 1
      %p86 = por %p84, %p85
      %p88 = scmp.ne.s32.totalorder %s73, %s87
      %p89 = scmp.eq.s32.totalorder %s21, 0
      %p90 = por %p88, %p89
      %s92 = sadd.s32 %s91, 1
      %p95 = scmp.eq.s32.totalorder %s15, 1
      %p96 = scmp.ne.s32.totalorder %s91, %s93
      %p97 = scmp.eq.s32.totalorder %s15, 0
      %p98 = por %p96, %p97
      %p99 = scmp.ne.s32.totalorder %s91, %s93
      %p100 = scmp.eq.s32.totalorder %s20, 1
      %p101 = por %p99, %p100
      %p102 = scmp.ne.s32.totalorder %s93, %s94
      %p103 = scmp.eq.s32.totalorder %s20, 0
      %p104 = por %p102, %p103
      %p105 = scmp.ne.s32.totalorder %s93, %s94
      %p106 = scmp.eq.s32.totalorder %s21, 1
      %p107 = por %p105, %p106
      %p109 = scmp.ne.s32.totalorder %s94, %s108
      %p110 = scmp.eq.s32.totalorder %s21, 0
      %p111 = por %p109, %p110
      %s113 = sadd.s32 %s112, 1
      %p116 = scmp.eq.s32.totalorder %s15, 1
      %p117 = scmp.ne.s32.totalorder %s112, %s114
      %p118 = scmp.eq.s32.totalorder %s15, 0
      %p119 = por %p117, %p118
      %p120 = scmp.ne.s32.totalorder %s112, %s114
      %p121 = scmp.eq.s32.totalorder %s20, 1
      %p122 = por %p120, %p121
      %p123 = scmp.ne.s32.totalorder %s114, %s115
      %p124 = scmp.eq.s32.totalorder %s20, 0
      %p125 = por %p123, %p124
      %p126 = scmp.ne.s32.totalorder %s114, %s115
      %p127 = scmp.eq.s32.totalorder %s21, 1
      %p128 = por %p126, %p127
      %p130 = scmp.ne.s32.totalorder %s115, %s129
      %p131 = scmp.eq.s32.totalorder %s21, 0
      %p132 = por %p130, %p131
      %s134 = sadd.s32 %s133, 1
      %p137 = scmp.eq.s32.totalorder %s15, 1
      %p138 = scmp.ne.s32.totalorder %s133, %s135
      %p139 = scmp.eq.s32.totalorder %s15, 0
      %p140 = por %p138, %p139
      %p141 = scmp.ne.s32.totalorder %s133, %s135
      %p142 = scmp.eq.s32.totalorder %s20, 1
      %p143 = por %p141, %p142
      %p144 = scmp.ne.s32.totalorder %s135, %s136
      %p145 = scmp.eq.s32.totalorder %s20, 0
      %p146 = por %p144, %p145
      %p147 = scmp.ne.s32.totalorder %s135, %s136
      %p148 = scmp.eq.s32.totalorder %s21, 1
      %p149 = por %p147, %p148
      %p151 = scmp.ne.s32.totalorder %s136, %s150
      %p152 = scmp.eq.s32.totalorder %s21, 0
      %p153 = por %p151, %p152
      %s154 = ssub.s32 %s15, %s22
      %p155 = scmp.eq.s32.totalorder %s154, 0
      %s157 = sadd.s32 %s156, 1
      %s158 = scalar_select %p155, %s156, %s157
      %p161 = pneg %p155
      %p162 = scmp.eq.s32.totalorder %s15, 1
      %p163 = por %p161, %p162
      %p164 = scmp.ne.s32.totalorder %s156, %s159
      %p165 = scmp.eq.s32.totalorder %s15, 0
      %p166 = por %p164, %p165
      %p167 = scmp.ne.s32.totalorder %s156, %s159
      %p168 = scmp.eq.s32.totalorder %s20, 1
      %p169 = por %p167, %p168
      %p170 = scmp.ne.s32.totalorder %s159, %s160
      %p171 = scmp.eq.s32.totalorder %s20, 0
      %p172 = por %p170, %p171
      %p173 = scmp.ne.s32.totalorder %s159, %s160
      %p174 = scmp.eq.s32.totalorder %s21, 1
      %p175 = por %p173, %p174
      %p177 = scmp.ne.s32.totalorder %s160, %s176
      %p178 = scmp.eq.s32.totalorder %s21, 0
      %p179 = por %p177, %p178
      %p180 = scmp.le.s32.totalorder 1, %s15
      %p181 = scmp.lt.s32.totalorder %s15, 3
      %p182 = pnand %p180, %p181
      %p183 = pneg %p182
      // Predicated region
      $region9: #{gcn_forward.1} parent=5 // pred_check
        _
      $region10: #{gcn_forward.1} parent=5 // pred_check_branch
        %185 = sbr.rel (%p182) target = $region12
      $region11: #{gcn_forward.1} parent=5 // pred_region
        %s186 = ssub.s32 %s15, 1
        // Predicated region
        $region13: #{gcn_forward.1} parent=11 // pred_check
          %p187 = pneg %p62
        $region14: #{gcn_forward.1} parent=11 // pred_check_branch
          %189 = sbr.rel (%p187) target = $region16
        $region15: #{gcn_forward.1} parent=11 // pred_region
          _
        $region16: #{gcn_forward.1} parent=11 // pred_fallthru
          _
        // Predicated region
        $region17: #{gcn_forward.1} parent=11 // pred_check
          %p190 = pneg %p83
        $region18: #{gcn_forward.1} parent=11 // pred_check_branch
          %192 = sbr.rel (%p190) target = $region20
        $region19: #{gcn_forward.1} parent=11 // pred_region
          _
        $region20: #{gcn_forward.1} parent=11 // pred_fallthru
          _
        // Predicated region
        $region21: #{gcn_forward.1} parent=11 // pred_check
          %p193 = pneg %p104
        $region22: #{gcn_forward.1} parent=11 // pred_check_branch
          %195 = sbr.rel (%p193) target = $region24
        $region23: #{gcn_forward.1} parent=11 // pred_region
          _
        $region24: #{gcn_forward.1} parent=11 // pred_fallthru
          _
        // Predicated region
        $region25: #{gcn_forward.1} parent=11 // pred_check
          %p196 = pneg %p125
        $region26: #{gcn_forward.1} parent=11 // pred_check_branch
          %198 = sbr.rel (%p196) target = $region28
        $region27: #{gcn_forward.1} parent=11 // pred_region
          _
        $region28: #{gcn_forward.1} parent=11 // pred_fallthru
          _
        // Predicated region
        $region29: #{gcn_forward.1} parent=11 // pred_check
          %p199 = pneg %p146
        $region30: #{gcn_forward.1} parent=11 // pred_check_branch
          %201 = sbr.rel (%p199) target = $region32
        $region31: #{gcn_forward.1} parent=11 // pred_region
          _
        $region32: #{gcn_forward.1} parent=11 // pred_fallthru
          _
      $region12: #{gcn_forward.1} parent=5 // pred_fallthru
        _
      %p202 = scmp.lt.s32.totalorder %s15, 2
      // Predicated region
      $region33: #{gcn_forward.1} parent=5 // pred_check
        %p203 = pneg %p202
      $region34: #{gcn_forward.1} parent=5 // pred_check_branch
        %205 = sbr.rel (%p203) target = $region36
      $region35: #{gcn_forward.1} parent=5 // pred_region
        // Predicated region
        $region37: #{gcn_forward.1} parent=35 // pred_check
          %p206 = pneg %p35
        $region38: #{gcn_forward.1} parent=35 // pred_check_branch
          %208 = sbr.rel (%p206) target = $region40
        $region39: #{gcn_forward.1} parent=35 // pred_region
          %s209 = smul.u32 8, %s15
          %p210 = scmp.lt.s32.totalorder %s209, 15
          %s211 = scalar_select %p210, %s209, 15
          %s212 = smul.addr %s211, 4
          %s213 = scalar_lea.vmem %s0, %s212
          %s214 = smul.u32 8, %s15
        $region40: #{gcn_forward.1} parent=35 // pred_fallthru
          _
      $region36: #{gcn_forward.1} parent=5 // pred_fallthru
        _
      %p215 = scmp.le.s32.totalorder 1, %s15
      %p216 = scmp.lt.s32.totalorder %s15, 3
      %p217 = pnand %p215, %p216
      %p218 = pneg %p217
      // Predicated region
      $region41: #{gcn_forward.1} parent=5 // pred_check
        _
      $region42: #{gcn_forward.1} parent=5 // pred_check_branch
        %220 = sbr.rel (%p217) target = $region44
      $region43: #{gcn_forward.1} parent=5 // pred_region
        %s221 = ssub.s32 %s15, 1
        %s222 = smul.u32 8, %s20
        %p223 = scmp.lt.s32.totalorder %s222, 15
        %s224 = scalar_select %p223, %s222, 15
        %s225 = smul.addr %s224, 4
        %s226 = scalar_lea.vmem %s0, %s225
        %p227 = pneg %p41
        %p228 = pneg %p38
        %p229 = pneg %p62
        %p230 = pneg %p59
        %p231 = pneg %p83
        %p232 = pneg %p80
        %p233 = pneg %p104
        %p234 = pneg %p101
        %p235 = pneg %p125
        %p236 = pneg %p122
        %p237 = pneg %p146
        %p238 = pneg %p143
        %p239 = pneg %p172
        %p240 = pneg %p169
        %s241 = sand.u32 %s159, 1
        %s242 = scalar_lea.sflag [#allocation5], %s241
        %s243 = sand.u32 %s159, 1
        %s244 = smul.addr %s243, 64
        %s245 = scalar_lea.vmem [#allocation4], %s244
        %s246 = smul.u32 8, %s20
        %p247 = scmp.lt.s32.totalorder %s246, 15
        %s248 = scalar_select %p247, %s246, 15
        %s249 = smul.addr %s248, 4
        %s250 = scalar_lea.vmem %s0, %s249
        %s251 = smul.u32 8, %s20
        %s252 = smul.u32 8, %s20
        %v254 = vld [vmem:[%s1] sm:$0xf]
        %v255 = vld [vmem:[%s1 + $0x4] sm:$0xf]
        %v256 = vld [vmem:[%s250] sm:$0xf]
        %v257 = vld [vmem:[%s250 + $0x4] sm:$0xf]
        %v258 = vld [vmem:[%s250 + $0x8] sm:$0xf]
        %v259 = vld [vmem:[%s250 + $0xc] sm:$0xf]
        %v260 = vld [vmem:[%s250 + $0x10] sm:$0xf]
        %v261 = vld [vmem:[%s250 + $0x14] sm:$0xf]
        %v262 = vld [vmem:[%s250 + $0x18] sm:$0xf]
        %v263 = vld [vmem:[%s250 + $0x1c] sm:$0xf]
        %v264 = vld [vmem:[%s2] sm:$0xf]
        %v265 = vld [vmem:[%s2 + $0x4] sm:$0xf]
        %v274 = vunpack.c.l.b16 %v256
        %v275 = vunpack.c.l.b16 %v257
        %v276 = vunpack.c.l.b16 %v258
        %v277 = vunpack.c.l.b16 %v259
        %v278 = vunpack.c.l.b16 %v260
        %v279 = vunpack.c.l.b16 %v261
        %v280 = vunpack.c.l.b16 %v262
        %v281 = vunpack.c.l.b16 %v263
        %v282 = vpack.c.b16 %v275, %v274
        %v283 = vpack.c.b16 %v277, %v276
        %v284 = vpack.c.b16 %v279, %v278
        %v285 = vpack.c.b16 %v281, %v280
        %v288 = vunpack.c.l.b16 %v264
        %v289 = vunpack.c.l.b16 %v265
        %v290 = vpack.c.b16 %v289, %v288
        %vm292 = vcmask 130048
        %v294 = vsel %vm292, %v282, 0
        %v297 = vsel %vm292, %v283, 0
        %v300 = vsel %vm292, %v284, 0
        %v303 = vsel %vm292, %v285, 0
        %305 = vmatprep.subr.bf16.mxu0 0
        %306 = vmatpush1.bf16.msra.mxu0 %v290
        %307 = vmatprep.subr.bf16.mxu0 0
        %308 = vmatpush1.bf16.msra.mxu0 0
        %309 = vmatprep.subr.bf16.mxu0 0
        %310 = vmatpush1.bf16.msra.mxu0 0
        %311 = vmatprep.subr.bf16.mxu0 0
        %312 = vmatpush1.bf16.msra.mxu0 0
        %313 = vmatprep.subr.bf16.mxu0 0
        %314 = vmatpush1.bf16.msra.mxu0 0
        %315 = vmatprep.subr.bf16.mxu0 0
        %316 = vmatpush1.bf16.msra.mxu0 0
        %317 = vmatprep.subr.bf16.mxu0 0
        %318 = vmatpush1.bf16.msra.mxu0 0
        %319 = vmatprep.subr.bf16.mxu0 0
        %320 = vmatpush1.bf16.msra.mxu0 0
        %321 = vmatprep.subr.bf16.mxu0 0
        %322 = vmatpush1.bf16.msra.mxu0 0
        %323 = vmatprep.subr.bf16.mxu0 0
        %324 = vmatpush1.bf16.msra.mxu0 0
        %325 = vmatprep.subr.bf16.mxu0 0
        %326 = vmatpush1.bf16.msra.mxu0 0
        %327 = vmatprep.subr.bf16.mxu0 0
        %328 = vmatpush1.bf16.msra.mxu0 0
        %329 = vmatprep.subr.bf16.mxu0 0
        %330 = vmatpush1.bf16.msra.mxu0 0
        %331 = vmatprep.subr.bf16.mxu0 0
        %332 = vmatpush1.bf16.msra.mxu0 0
        %333 = vmatprep.subr.bf16.mxu0 0
        %334 = vmatpush1.bf16.msra.mxu0 0
        %335 = vmatprep.subr.bf16.mxu0 0
        %336 = vmatpush1.bf16.msra.mxu0 0
        %337 = vmatprep.mubr.bf16.mxu0 0
        %338 = vmatmul.mubr.bf16.gmra.mrb[0].mxu0 %v294
        %v339 = vpop.f32.mrb[0].mxu0
        %v340 = vadd.f32 0.0, %v339
        %v341 = vpop.f32.mrb[0].mxu0
        %v342 = vpop.f32.mrb[0].mxu0
        %v343 = vadd.f32 0.0, %v342
        %v344 = vpop.f32.mrb[0].mxu0
        %345 = vmatprep.mubr.bf16.mxu0 0
        %346 = vmatmul.mubr.bf16.gmra.mrb[0].mxu0 %v297
        %v347 = vpop.f32.mrb[0].mxu0
        %v348 = vadd.f32 0.0, %v347
        %v349 = vpop.f32.mrb[0].mxu0
        %v350 = vpop.f32.mrb[0].mxu0
        %v351 = vadd.f32 0.0, %v350
        %v352 = vpop.f32.mrb[0].mxu0
        %353 = vmatprep.mubr.bf16.mxu0 0
        %354 = vmatmul.mubr.bf16.gmra.mrb[0].mxu0 %v300
        %v355 = vpop.f32.mrb[0].mxu0
        %v356 = vadd.f32 0.0, %v355
        %v357 = vpop.f32.mrb[0].mxu0
        %v358 = vpop.f32.mrb[0].mxu0
        %v359 = vadd.f32 0.0, %v358
        %v360 = vpop.f32.mrb[0].mxu0
        %361 = vmatprep.mubr.bf16.mxu0 0
        %362 = vmatmul.mubr.bf16.gmra.mrb[0].mxu0 %v303
        %v363 = vpop.f32.mrb[0].mxu0
        %v364 = vadd.f32 0.0, %v363
        %v365 = vpop.f32.mrb[0].mxu0
        %v366 = vpop.f32.mrb[0].mxu0
        %v367 = vadd.f32 0.0, %v366
        %v368 = vpop.f32.mrb[0].mxu0
        %369 = vdwg.mxu0
        %vm370 = vcmask 261120
        %371 = vst.msk [vmem:[#allocation2] sm:$0xff] %vm370, %v340
        %372 = vst.msk [vmem:[#allocation2 + $0x8] sm:$0xff] %vm370, %v343
        %375 = vrot.lane.b32.xlu0 %v348, 32
        %v376 = vpop.permute.xlu0 %375
        %377 = vrot.lane.b32.xlu0 %v351, 32
        %v378 = vpop.permute.xlu0 %377
        %vm381 = vcmask 523520
        %382 = vst.msk [vmem:[#allocation2] sm:$0xff] %vm381, %v376
        %383 = vst.msk [vmem:[#allocation2 + $0x8] sm:$0xff] %vm381, %v378
        %386 = vrot.lane.b32.xlu0 %v356, 64
        %v387 = vpop.permute.xlu0 %386
        %388 = vrot.lane.b32.xlu0 %v359, 64
        %v389 = vpop.permute.xlu0 %388
        %vm392 = vcmask 785920
        %393 = vst.msk [vmem:[#allocation2] sm:$0xff] %vm392, %v387
        %394 = vst.msk [vmem:[#allocation2 + $0x8] sm:$0xff] %vm392, %v389
        %397 = vrot.lane.b32.xlu0 %v364, 96
        %v398 = vpop.permute.xlu0 %397
        %399 = vrot.lane.b32.xlu0 %v367, 96
        %v400 = vpop.permute.xlu0 %399
        %vm403 = vcmask 1048320
        %404 = vst.msk [vmem:[#allocation2] sm:$0xff] %vm403, %v398
        %405 = vst.msk [vmem:[#allocation2 + $0x8] sm:$0xff] %vm403, %v400
        %v406 = vld [vmem:[#allocation2] sm:$0xff]
        %v407 = vld [vmem:[#allocation2 + $0x8] sm:$0xff]
        %v408 = vpack.c.bf16 %v407, %v406
        %v409 = vld [vmem:[%s3] sm:$0x1]
        %v411 = vlaneseq
        %v412 = vshrl.u32 %v411, 7
        %v413 = vsub.s32 0, %v412
        %v414 = vrot.slane %v409, %v413
        %v418 = vunpack.c.l.b16 %v254
        %v419 = vunpack.c.l.b16 %v255
        %v420 = vpack.c.b16 %v419, %v418
        %v422 = vsel %vm292, %v420, 0
        %424 = vmatprep.subr.bf16.mxu0 0
        %425 = vmatpush1.bf16.msra.mxu0 %v408
        %426 = vmatprep.subr.bf16.mxu0 0
        %427 = vmatpush1.bf16.msra.mxu0 0
        %428 = vmatprep.subr.bf16.mxu0 0
        %429 = vmatpush1.bf16.msra.mxu0 0
        %430 = vmatprep.subr.bf16.mxu0 0
        %431 = vmatpush1.bf16.msra.mxu0 0
        %432 = vmatprep.subr.bf16.mxu0 0
        %433 = vmatpush1.bf16.msra.mxu0 0
        %434 = vmatprep.subr.bf16.mxu0 0
        %435 = vmatpush1.bf16.msra.mxu0 0
        %436 = vmatprep.subr.bf16.mxu0 0
        %437 = vmatpush1.bf16.msra.mxu0 0
        %438 = vmatprep.subr.bf16.mxu0 0
        %439 = vmatpush1.bf16.msra.mxu0 0
        %440 = vmatprep.subr.bf16.mxu0 0
        %441 = vmatpush1.bf16.msra.mxu0 0
        %442 = vmatprep.subr.bf16.mxu0 0
        %443 = vmatpush1.bf16.msra.mxu0 0
        %444 = vmatprep.subr.bf16.mxu0 0
        %445 = vmatpush1.bf16.msra.mxu0 0
        %446 = vmatprep.subr.bf16.mxu0 0
        %447 = vmatpush1.bf16.msra.mxu0 0
        %448 = vmatprep.subr.bf16.mxu0 0
        %449 = vmatpush1.bf16.msra.mxu0 0
        %450 = vmatprep.subr.bf16.mxu0 0
        %451 = vmatpush1.bf16.msra.mxu0 0
        %452 = vmatprep.subr.bf16.mxu0 0
        %453 = vmatpush1.bf16.msra.mxu0 0
        %454 = vmatprep.subr.bf16.mxu0 0
        %455 = vmatpush1.bf16.msra.mxu0 0
        %456 = vmatprep.mubr.bf16.mxu0 0
        %457 = vmatmul.mubr.bf16.gmra.mrb[0].mxu0 %v422
        %v458 = vpop.f32.mrb[0].mxu0
        %v459 = vadd.f32 %v414, %v458
        %v460 = vpop.f32.mrb[0].mxu0
        %v461 = vpop.f32.mrb[0].mxu0
        %v462 = vadd.f32 %v414, %v461
        %v463 = vpop.f32.mrb[0].mxu0
        %464 = vdwg.mxu0
        %v465 = vmax.f32 %v459, 0.0
        %v466 = vmax.f32 %v462, 0.0
        %v467 = vpack.c.bf16 %v466, %v465
        %468 = vmatprep.subr.bf16.mxu0 0
        %469 = vmatpush1.bf16.msra.mxu0 %v467
        %470 = vmatprep.subr.bf16.mxu0 0
        %471 = vmatpush1.bf16.msra.mxu0 0
        %472 = vmatprep.subr.bf16.mxu0 0
        %473 = vmatpush1.bf16.msra.mxu0 0
        %474 = vmatprep.subr.bf16.mxu0 0
        %475 = vmatpush1.bf16.msra.mxu0 0
        %476 = vmatprep.subr.bf16.mxu0 0
        %477 = vmatpush1.bf16.msra.mxu0 0
        %478 = vmatprep.subr.bf16.mxu0 0
        %479 = vmatpush1.bf16.msra.mxu0 0
        %480 = vmatprep.subr.bf16.mxu0 0
        %481 = vmatpush1.bf16.msra.mxu0 0
        %482 = vmatprep.subr.bf16.mxu0 0
        %483 = vmatpush1.bf16.msra.mxu0 0
        %484 = vmatprep.subr.bf16.mxu0 0
        %485 = vmatpush1.bf16.msra.mxu0 0
        %486 = vmatprep.subr.bf16.mxu0 0
        %487 = vmatpush1.bf16.msra.mxu0 0
        %488 = vmatprep.subr.bf16.mxu0 0
        %489 = vmatpush1.bf16.msra.mxu0 0
        %490 = vmatprep.subr.bf16.mxu0 0
        %491 = vmatpush1.bf16.msra.mxu0 0
        %492 = vmatprep.subr.bf16.mxu0 0
        %493 = vmatpush1.bf16.msra.mxu0 0
        %494 = vmatprep.subr.bf16.mxu0 0
        %495 = vmatpush1.bf16.msra.mxu0 0
        %496 = vmatprep.subr.bf16.mxu0 0
        %497 = vmatpush1.bf16.msra.mxu0 0
        %498 = vmatprep.subr.bf16.mxu0 0
        %499 = vmatpush1.bf16.msra.mxu0 0
        %500 = vmatprep.mubr.bf16.mxu0 0
        %501 = vmatmul.mubr.bf16.gmra.mrb[0].mxu0 %v422
        %v502 = vpop.f32.mrb[0].mxu0
        %v503 = vadd.f32 0.0, %v502
        %v504 = vpop.f32.mrb[0].mxu0
        %v505 = vpop.f32.mrb[0].mxu0
        %v506 = vadd.f32 0.0, %v505
        %v507 = vpop.f32.mrb[0].mxu0
        %508 = vdwg.mxu0
        %509 = vst.msk [vmem:[#allocation3] sm:$0xff] %vm370, %v503
        %510 = vst.msk [vmem:[#allocation3 + $0x8] sm:$0xff] %vm370, %v506
        %513 = vrot.lane.b32.xlu0 %v503, 96
        %v514 = vpop.permute.xlu0 %513
        %515 = vrot.lane.b32.xlu0 %v506, 96
        %v516 = vpop.permute.xlu0 %515
        %519 = vst.msk [vmem:[#allocation3 + $0x10] sm:$0xff] %vm370, %v514
        %520 = vst.msk [vmem:[#allocation3 + $0x18] sm:$0xff] %vm370, %v516
        %521 = vrot.lane.b32.xlu0 %v503, 64
        %v522 = vpop.permute.xlu0 %521
        %523 = vrot.lane.b32.xlu0 %v506, 64
        %v524 = vpop.permute.xlu0 %523
        %527 = vst.msk [vmem:[#allocation3 + $0x20] sm:$0xff] %vm370, %v522
        %528 = vst.msk [vmem:[#allocation3 + $0x28] sm:$0xff] %vm370, %v524
        %529 = vrot.lane.b32.xlu0 %v503, 32
        %v530 = vpop.permute.xlu0 %529
        %531 = vrot.lane.b32.xlu0 %v506, 32
        %v532 = vpop.permute.xlu0 %531
        %535 = vst.msk [vmem:[#allocation3 + $0x30] sm:$0xff] %vm370, %v530
        %536 = vst.msk [vmem:[#allocation3 + $0x38] sm:$0xff] %vm370, %v532
        %v537 = vld [vmem:[#allocation3] sm:$0xff]
        %v538 = vld [vmem:[#allocation3 + $0x8] sm:$0xff]
        %v539 = vld [vmem:[#allocation3 + $0x10] sm:$0xff]
        %v540 = vld [vmem:[#allocation3 + $0x18] sm:$0xff]
        %v541 = vld [vmem:[#allocation3 + $0x20] sm:$0xff]
        %v542 = vld [vmem:[#allocation3 + $0x28] sm:$0xff]
        %v543 = vld [vmem:[#allocation3 + $0x30] sm:$0xff]
        %v544 = vld [vmem:[#allocation3 + $0x38] sm:$0xff]
        %v545 = vpack.c.bf16 %v538, %v537
        %v546 = vpack.c.bf16 %v540, %v539
        %v547 = vpack.c.bf16 %v542, %v541
        %v548 = vpack.c.bf16 %v544, %v543
        %v549 = vld [vmem:[%s4] sm:$0xf]
        %v550 = vld [vmem:[%s4 + $0x4] sm:$0xf]
        %v551 = vld [vmem:[%s4 + $0x8] sm:$0xf]
        %v552 = vld [vmem:[%s4 + $0xc] sm:$0xf]
        %v553 = vld [vmem:[%s5] sm:$0x1]
        %v555 = vlaneseq
        %v556 = vshrl.u32 %v555, 7
        %v557 = vsub.s32 0, %v556
        %v558 = vrot.slane %v553, %v557
        %v564 = vunpack.c.l.b16 %v549
        %v565 = vunpack.c.l.b16 %v550
        %v566 = vunpack.c.l.b16 %v551
        %v567 = vunpack.c.l.b16 %v552
        %v568 = vpack.c.b16 %v565, %v564
        %v569 = vpack.c.b16 %v567, %v566
        %v573 = vsel %vm370, %v545, 0
        %v576 = vsel %vm370, %v546, 0
        %v579 = vsel %vm370, %v547, 0
        %v582 = vsel %vm370, %v548, 0
        %584 = vmatprep.subr.bf16.mxu0 0
        %585 = vmatpush1.bf16.msra.mxu0 %v568
        %586 = vmatprep.subr.bf16.mxu0 0
        %587 = vmatpush1.bf16.msra.mxu0 %v569
        %588 = vmatprep.subr.bf16.mxu0 0
        %589 = vmatpush1.bf16.msra.mxu0 0
        %590 = vmatprep.subr.bf16.mxu0 0
        %591 = vmatpush1.bf16.msra.mxu0 0
        %592 = vmatprep.subr.bf16.mxu0 0
        %593 = vmatpush1.bf16.msra.mxu0 0
        %594 = vmatprep.subr.bf16.mxu0 0
        %595 = vmatpush1.bf16.msra.mxu0 0
        %596 = vmatprep.subr.bf16.mxu0 0
        %597 = vmatpush1.bf16.msra.mxu0 0
        %598 = vmatprep.subr.bf16.mxu0 0
        %599 = vmatpush1.bf16.msra.mxu0 0
        %600 = vmatprep.subr.bf16.mxu0 0
        %601 = vmatpush1.bf16.msra.mxu0 0
        %602 = vmatprep.subr.bf16.mxu0 0
        %603 = vmatpush1.bf16.msra.mxu0 0
        %604 = vmatprep.subr.bf16.mxu0 0
        %605 = vmatpush1.bf16.msra.mxu0 0
        %606 = vmatprep.subr.bf16.mxu0 0
        %607 = vmatpush1.bf16.msra.mxu0 0
        %608 = vmatprep.subr.bf16.mxu0 0
        %609 = vmatpush1.bf16.msra.mxu0 0
        %610 = vmatprep.subr.bf16.mxu0 0
        %611 = vmatpush1.bf16.msra.mxu0 0
        %612 = vmatprep.subr.bf16.mxu0 0
        %613 = vmatpush1.bf16.msra.mxu0 0
        %614 = vmatprep.subr.bf16.mxu0 0
        %615 = vmatpush1.bf16.msra.mxu0 0
        %616 = vmatprep.mubr.bf16.mxu0 0
        %617 = vmatmul.mubr.bf16.gmra.mrb[0].mxu0 %v573
        %v618 = vpop.f32.mrb[0].mxu0
        %v619 = vadd.f32 %v558, %v618
        %v620 = vpop.f32.mrb[0].mxu0
        %v621 = vpop.f32.mrb[0].mxu0
        %v622 = vadd.f32 %v558, %v621
        %v623 = vpop.f32.mrb[0].mxu0
        %624 = vmatprep.mubr.bf16.mxu0 0
        %625 = vmatmul.mubr.bf16.gmra.mrb[0].mxu0 %v576
        %v626 = vpop.f32.mrb[0].mxu0
        %v627 = vadd.f32 %v558, %v626
        %v628 = vpop.f32.mrb[0].mxu0
        %v629 = vpop.f32.mrb[0].mxu0
        %v630 = vadd.f32 %v558, %v629
        %v631 = vpop.f32.mrb[0].mxu0
        %632 = vmatprep.mubr.bf16.mxu0 0
        %633 = vmatmul.mubr.bf16.gmra.mrb[0].mxu0 %v579
        %v634 = vpop.f32.mrb[0].mxu0
        %v635 = vadd.f32 %v558, %v634
        %v636 = vpop.f32.mrb[0].mxu0
        %v637 = vpop.f32.mrb[0].mxu0
        %v638 = vadd.f32 %v558, %v637
        %v639 = vpop.f32.mrb[0].mxu0
        %640 = vmatprep.mubr.bf16.mxu0 0
        %641 = vmatmul.mubr.bf16.gmra.mrb[0].mxu0 %v582
        %v642 = vpop.f32.mrb[0].mxu0
        %v643 = vadd.f32 %v558, %v642
        %v644 = vpop.f32.mrb[0].mxu0
        %v645 = vpop.f32.mrb[0].mxu0
        %v646 = vadd.f32 %v558, %v645
        %v647 = vpop.f32.mrb[0].mxu0
        %648 = vdwg.mxu0
        %v649 = vsel %vm292, %v619, -inf
        %650 = vmax.xlane.f32.xlu0 %v649
        %v651 = vpop.xlane.xlu0 %650
        %v652 = vsel %vm292, %v622, -inf
        %653 = vmax.xlane.f32.xlu0 %v652
        %v654 = vpop.xlane.xlu0 %653
        %v655 = vsel %vm292, %v627, -inf
        %656 = vmax.xlane.f32.xlu0 %v655
        %v657 = vpop.xlane.xlu0 %656
        %v658 = vsel %vm292, %v630, -inf
        %659 = vmax.xlane.f32.xlu0 %v658
        %v660 = vpop.xlane.xlu0 %659
        %v661 = vsel %vm292, %v635, -inf
        %662 = vmax.xlane.f32.xlu0 %v661
        %v663 = vpop.xlane.xlu0 %662
        %v664 = vsel %vm292, %v638, -inf
        %665 = vmax.xlane.f32.xlu0 %v664
        %v666 = vpop.xlane.xlu0 %665
        %v667 = vsel %vm292, %v643, -inf
        %668 = vmax.xlane.f32.xlu0 %v667
        %v669 = vpop.xlane.xlu0 %668
        %v670 = vsel %vm292, %v646, -inf
        %671 = vmax.xlane.f32.xlu0 %v670
        %v672 = vpop.xlane.xlu0 %671
        %v673 = vsub.f32 %v619, %v651
        %v674 = vsub.f32 %v622, %v654
        %v675 = vsub.f32 %v627, %v657
        %v676 = vsub.f32 %v630, %v660
        %v677 = vsub.f32 %v635, %v663
        %v678 = vsub.f32 %v638, %v666
        %v679 = vsub.f32 %v643, %v669
        %v680 = vsub.f32 %v646, %v672
        %v681 = vmul.f32 %v673, 1.442695
        %v682 = vpow.pop %v681
        %v683 = vmul.f32 %v674, 1.442695
        %v684 = vpow.pop %v683
        %v685 = vmul.f32 %v675, 1.442695
        %v686 = vpow.pop %v685
        %v687 = vmul.f32 %v676, 1.442695
        %v688 = vpow.pop %v687
        %v689 = vmul.f32 %v677, 1.442695
        %v690 = vpow.pop %v689
        %v691 = vmul.f32 %v678, 1.442695
        %v692 = vpow.pop %v691
        %v693 = vmul.f32 %v679, 1.442695
        %v694 = vpow.pop %v693
        %v695 = vmul.f32 %v680, 1.442695
        %v696 = vpow.pop %v695
        %v697 = vsel %vm292, %v682, 0.0
        %698 = vadd.xlane.f32.xlu0 %v697
        %v699 = vpop.xlane.xlu0 %698
        %v700 = vsel %vm292, %v684, 0.0
        %701 = vadd.xlane.f32.xlu0 %v700
        %v702 = vpop.xlane.xlu0 %701
        %v703 = vsel %vm292, %v686, 0.0
        %704 = vadd.xlane.f32.xlu0 %v703
        %v705 = vpop.xlane.xlu0 %704
        %v706 = vsel %vm292, %v688, 0.0
        %707 = vadd.xlane.f32.xlu0 %v706
        %v708 = vpop.xlane.xlu0 %707
        %v709 = vsel %vm292, %v690, 0.0
        %710 = vadd.xlane.f32.xlu0 %v709
        %v711 = vpop.xlane.xlu0 %710
        %v712 = vsel %vm292, %v692, 0.0
        %713 = vadd.xlane.f32.xlu0 %v712
        %v714 = vpop.xlane.xlu0 %713
        %v715 = vsel %vm292, %v694, 0.0
        %716 = vadd.xlane.f32.xlu0 %v715
        %v717 = vpop.xlane.xlu0 %716
        %v718 = vsel %vm292, %v696, 0.0
        %719 = vadd.xlane.f32.xlu0 %v718
        %v720 = vpop.xlane.xlu0 %719
        %v721 = vlog2.pop %v699
        %v722 = vmul.f32 %v721, 0.6931472
        %v723 = vlog2.pop %v702
        %v724 = vmul.f32 %v723, 0.6931472
        %v725 = vlog2.pop %v705
        %v726 = vmul.f32 %v725, 0.6931472
        %v727 = vlog2.pop %v708
        %v728 = vmul.f32 %v727, 0.6931472
        %v729 = vlog2.pop %v711
        %v730 = vmul.f32 %v729, 0.6931472
        %v731 = vlog2.pop %v714
        %v732 = vmul.f32 %v731, 0.6931472
        %v733 = vlog2.pop %v717
        %v734 = vmul.f32 %v733, 0.6931472
        %v735 = vlog2.pop %v720
        %v736 = vmul.f32 %v735, 0.6931472
        %v737 = vsub.f32 %v673, %v722
        %v738 = vsub.f32 %v674, %v724
        %v739 = vsub.f32 %v675, %v726
        %v740 = vsub.f32 %v676, %v728
        %v741 = vsub.f32 %v677, %v730
        %v742 = vsub.f32 %v678, %v732
        %v743 = vsub.f32 %v679, %v734
        %v744 = vsub.f32 %v680, %v736
        %745 = vst.msk [vmem:[%s245] sm:$0xff] %vm292, %v737
        %746 = vst.msk [vmem:[%s245 + $0x8] sm:$0xff] %vm292, %v738
        %747 = vst.msk [vmem:[%s245 + $0x10] sm:$0xff] %vm292, %v739
        %748 = vst.msk [vmem:[%s245 + $0x18] sm:$0xff] %vm292, %v740
        %749 = vst.msk [vmem:[%s245 + $0x20] sm:$0xff] %vm292, %v741
        %750 = vst.msk [vmem:[%s245 + $0x28] sm:$0xff] %vm292, %v742
        %751 = vst.msk [vmem:[%s245 + $0x30] sm:$0xff] %vm292, %v743
        %752 = vst.msk [vmem:[%s245 + $0x38] sm:$0xff] %vm292, %v744
        %s753 = sand.u32 %s159, 1
        %s754 = scalar_lea.sflag [#allocation5], %s753
        %s755 = sand.u32 %s159, 1
        %s756 = smul.addr %s755, 64
        %s757 = scalar_lea.vmem [#allocation4], %s756
        // Predicated region
        $region45: #{gcn_forward.1} parent=43 // pred_check
          %p758 = pneg %p169
        $region46: #{gcn_forward.1} parent=43 // pred_check_branch
          %760 = sbr.rel (%p758) target = $region48
        $region47: #{gcn_forward.1} parent=43 // pred_region
          %s761 = smul.u32 8, %s20
          %s763 = ssub.s32 1024, 1024
          %764 = vsyncadd %s754, %s763
          %s765 = smul.addr %s761, 128
          %s766 = scalar_lea.hbm %s6, %s765
          %s767 = sshll.u32 %s757, 4
          %s768 = int_to_ptr.vmem [resolvable:$true] %s767
          %773 = dma.vmem_to_hbm [thread:$0]  %s768, 1024, %s766, %s754, 128, 128, 8
        $region48: #{gcn_forward.1} parent=43 // pred_fallthru
          _
      $region44: #{gcn_forward.1} parent=5 // pred_fallthru
        _
      %p774 = scmp.le.s32.totalorder 2, %s15
      // Predicated region
      $region49: #{gcn_forward.1} parent=5 // pred_check
        %p775 = pneg %p774
      $region50: #{gcn_forward.1} parent=5 // pred_check_branch
        %777 = sbr.rel (%p775) target = $region52
      $region51: #{gcn_forward.1} parent=5 // pred_region
        %s778 = ssub.s32 %s15, 2
        // Predicated region
        $region53: #{gcn_forward.1} parent=51 // pred_check
          %p779 = pneg %p175
        $region54: #{gcn_forward.1} parent=51 // pred_check_branch
          %781 = sbr.rel (%p779) target = $region56
        $region55: #{gcn_forward.1} parent=51 // pred_region
          %s782 = sand.u32 %s160, 1
          %s783 = scalar_lea.sflag [#allocation5], %s782
          %s784 = sand.u32 %s160, 1
          %s785 = smul.addr %s784, 64
          %s786 = scalar_lea.vmem [#allocation4], %s785
          %787 = dma.done %s783, 1024
        $region56: #{gcn_forward.1} parent=51 // pred_fallthru
          _
      $region52: #{gcn_forward.1} parent=5 // pred_fallthru
        _
    $region6: #{gcn_forward.1} parent=1 // loop_footer
      %s19 = sadd.s32 1, %s15
    $region7: #{gcn_forward.1} parent=1 // loop_footer_branch
      %14 = sbr.rel target = $region3
    $region8: #{gcn_forward.1} parent=1 // loop_exit
      _
    %788 = vsyncpa [#allocation5], 1
    %s789 = scalar_lea.sflag [#allocation5], 1
    %790 = vsyncpa %s789, 1

</llo_original>
